<compile_context>
chip_gen: v5e
topology: v5e:2x2
jax: 0.10.0
libtpu: 0.0.40
codegen_flags: <defaults>
</compile_context>

<pallas_src>
import jax
import jax.numpy as jnp
from jax import lax
from jax.experimental import pallas as pl
from jax.experimental.pallas import tpu as pltpu


def _round_up(x: int, m: int) -> int:
    return ((x + m - 1) // m) * m


def _largest_divisor_leq(n: int, cap: int) -> int:
    for d in range(min(n, cap), 0, -1):
        if n % d == 0:
            return d
    return 1


def rnn_kernel(xproj_ref, whh_ref, h_ref):
    """One (batch-block, time-chunk) grid step of the recurrence.

    xproj_ref : (T_CHUNK, BN, Hp)  precomputed X_t @ W_xh^T + b_xh + b_hh (f32)
    whh_ref   : (Hp, Hp)           W_hh^T (in, out), zero-padded
    h_ref     : (BN, Hp)           running hidden state; output-resident across
                                   the time grid axis (accumulator pattern)
    """
    # First time-chunk: H_0 = 0 (matches torch.zeros(N, hidden_size)).
    @pl.when(pl.program_id(1) == 0)
    def _():
        h_ref[...] = jnp.zeros_like(h_ref)

    whh = whh_ref[...]               # hoisted out of the loop; loaded once
    n_steps = xproj_ref.shape[0]

    def step(t, h):
        # Single MXU push per step; everything independent of h (input
        # projection + both biases) was precomputed outside the serial chain.
        pre = jnp.dot(h.astype(whh.dtype), whh,
                      preferred_element_type=jnp.float32) + xproj_ref[t]
        return jnp.tanh(pre)         # tanh + carry stay f32

    h = lax.fori_loop(0, n_steps, step, h_ref[...], unroll=True)
    h_ref[...] = h


def simple_rnn_forward(X, E_table, W_hh, b_hh, W_xh, b_xh,
                       *, mxu_dtype=jnp.float32, time_chunk_cap=32):
    """X: (N, L) int32 tokens. Returns H_last: (N, hidden) float32.

    For large hidden sizes pass mxu_dtype=jnp.bfloat16 (f32 accumulation is
    kept via preferred_element_type); default stays f32 for exactness at the
    small demo shapes.
    """
    N, L = X.shape
    hidden = W_hh.shape[0]

    # ---- JAX glue: embedding gather + input projection (one big matmul,
    # off the serial chain), time-major layout, lane/sublane zero-padding ----
    x_emb = jnp.take(E_table, X.T, axis=0)                       # (L, N, E)
    bias = (b_hh + b_xh).astype(jnp.float32)                     # (H,)
    x_proj = jnp.einsum("lne,he->lnh", x_emb, W_xh,
                        preferred_element_type=jnp.float32) + bias  # (L, N, H)

    Hp = _round_up(hidden, 128)              # lane-dense hidden
    BN = min(_round_up(N, 8), 128)           # sublane-dense batch block
    Np = _round_up(N, BN)

    x_proj = jnp.pad(x_proj, ((0, 0), (0, Np - N), (0, Hp - hidden)))
    whh_t = jnp.pad(W_hh.T, ((0, Hp - hidden), (0, Hp - hidden))).astype(mxu_dtype)

    T_CHUNK = _largest_divisor_leq(L, time_chunk_cap)
    grid = (Np // BN, L // T_CHUNK)          # (parallel batch, serial time)

    # VMEM budget from the actual resident blocks (+ headroom).
    vmem_limit = int(
        2 * T_CHUNK * BN * Hp * 4                               # streamed x_proj (2-buf)
        + 2 * Hp * Hp * jnp.dtype(mxu_dtype).itemsize           # Whh
        + 2 * BN * Hp * 4                                       # resident h
        + (8 << 20))                                            # headroom

    h_pad = pl.pallas_call(
        rnn_kernel,
        out_shape=jax.ShapeDtypeStruct((Np, Hp), jnp.float32),
        grid_spec=pltpu.PrefetchScalarGridSpec(
            num_scalar_prefetch=0,
            grid=grid,
            in_specs=[
                pl.BlockSpec((T_CHUNK, BN, Hp), lambda nb, tc: (tc, nb, 0)),
                pl.BlockSpec((Hp, Hp), lambda nb, tc: (0, 0)),
            ],
            out_specs=pl.BlockSpec((BN, Hp), lambda nb, tc: (nb, 0)),
        ),
        compiler_params=pltpu.CompilerParams(
            dimension_semantics=("parallel", "arbitrary"),
            vmem_limit_bytes=vmem_limit,
        ),
    )(x_proj, whh_t)

    return h_pad[:N, :hidden]


def reference_forward(X, E_table, W_hh, b_hh, W_xh, b_xh):
    """Pure-JAX reference mirroring the PyTorch loop."""
    N, L = X.shape
    hidden = W_hh.shape[0]
    H = jnp.zeros((N, hidden), jnp.float32)
    for t in range(L):
        x_t = E_table[X[:, t]]
        H = jnp.tanh(H @ W_hh.T + b_hh + x_t @ W_xh.T + b_xh)
    return H


if __name__ == "__main__":
    vocab_size, embed_size, hidden_size = 50, 32, 32
    N, L = 2, 16

    key = jax.random.PRNGKey(0)
    k_tok, k_emb, k_whh, k_bhh, k_wxh, k_bxh = jax.random.split(key, 6)

    X = jax.random.randint(k_tok, (N, L), 0, vocab_size, dtype=jnp.int32)

    # Deterministic parameter init (shapes follow torch.nn.{Embedding,Linear}).
    E_table = jax.random.normal(k_emb, (vocab_size, embed_size), jnp.float32) * 0.1
    W_hh = jax.random.normal(k_whh, (hidden_size, hidden_size), jnp.float32) * 0.1
    b_hh = jax.random.normal(k_bhh, (hidden_size,), jnp.float32) * 0.1
    W_xh = jax.random.normal(k_wxh, (hidden_size, embed_size), jnp.float32) * 0.1
    b_xh = jax.random.normal(k_bxh, (hidden_size,), jnp.float32) * 0.1

    out = simple_rnn_forward(X, E_table, W_hh, b_hh, W_xh, b_xh)
    out = jax.block_until_ready(out)

    ref = reference_forward(X, E_table, W_hh, b_hh, W_xh, b_xh)
    assert out.shape == (N, hidden_size)
    assert jnp.allclose(out, ref, atol=1e-4, rtol=1e-4), "mismatch vs reference"

    print("KERNEL_OK")
</pallas_src>

<mosaic_0001>
module attributes {stable_mosaic.version = 11 : i64} {
  func.func @rnn_kernel(%arg0: i32, %arg1: i32, %arg2: memref<16x8x128xf32, #tpu.memory_space<vmem>>, %arg3: memref<128x128xf32, #tpu.memory_space<vmem>>, %arg4: memref<8x128xf32, #tpu.memory_space<vmem>>) attributes {dimension_semantics = [#tpu.dimension_semantics<parallel>, #tpu.dimension_semantics<arbitrary>], iteration_bounds = array<i64: 1, 1>, scalar_prefetch = 0 : i64, scratch_operands = 0 : i64, tpu.core_type = #tpu.core_type<tc>, window_params = [{transform_indices = @transform_0, window_bounds = array<i64: 16, 8, 128>}, {pipeline_mode = #tpu.pipeline_mode<synchronous>, transform_indices = @transform_1, window_bounds = array<i64: 128, 128>}, {transform_indices = @transform_2, window_bounds = array<i64: 8, 128>}]} {
    %c0_i32 = arith.constant 0 : i32
    %0 = arith.cmpi eq, %arg1, %c0_i32 : i32
    %1 = arith.extui %0 : i1 to i32
    %c0_i32_0 = arith.constant 0 : i32
    %2 = arith.cmpi ne, %1, %c0_i32_0 : i32
    scf.if %2 {
      %cst_54 = arith.constant 0.000000e+00 : f32
      %102 = vector.broadcast %cst_54 : f32 to vector<8x128xf32>
      %c0_55 = arith.constant 0 : index
      %c0_56 = arith.constant 0 : index
      %103 = vector.load %arg4[%c0_55, %c0_56] : memref<8x128xf32, #tpu.memory_space<vmem>>, vector<8x128xf32>
      tpu.vector_store %arg4[%c0_55, %c0_56], %102 {strides = array<i32>} : memref<8x128xf32, #tpu.memory_space<vmem>>, vector<8x128xf32>,
    } else {
    }
    %c0 = arith.constant 0 : index
    %c0_1 = arith.constant 0 : index
    %3 = vector.load %arg3[%c0, %c0_1] : memref<128x128xf32, #tpu.memory_space<vmem>>, vector<128x128xf32>
    %c0_2 = arith.constant 0 : index
    %c0_3 = arith.constant 0 : index
    %4 = vector.load %arg4[%c0_2, %c0_3] : memref<8x128xf32, #tpu.memory_space<vmem>>, vector<8x128xf32>
    %c0_i32_4 = arith.constant 0 : i32
    %cst = arith.constant dense<0.000000e+00> : vector<8x128xf32>
    %5 = tpu.matmul %4, %3, %cst {dimension_numbers = #tpu.dot_dimension_numbers<[1], [0], [0], [1], [0, 0, 1, 1], [], []>} : vector<8x128xf32>, vector<128x128xf32>, vector<8x128xf32> -> vector<8x128xf32>
    %6 = arith.index_cast %c0_i32_4 : i32 to index
    %c0_5 = arith.constant 0 : index
    %c0_6 = arith.constant 0 : index
    %7 = vector.load %arg2[%6, %c0_5, %c0_6] : memref<16x8x128xf32, #tpu.memory_space<vmem>>, vector<1x8x128xf32>
    %8 = vector.shape_cast %7 : vector<1x8x128xf32> to vector<8x128xf32>
    %9 = arith.addf %5, %8 : vector<8x128xf32>
    %10 = math.tanh %9 : vector<8x128xf32>
    %c1_i32 = arith.constant 1 : i32
    %cst_7 = arith.constant dense<0.000000e+00> : vector<8x128xf32>
    %11 = tpu.matmul %10, %3, %cst_7 {dimension_numbers = #tpu.dot_dimension_numbers<[1], [0], [0], [1], [0, 0, 1, 1], [], []>} : vector<8x128xf32>, vector<128x128xf32>, vector<8x128xf32> -> vector<8x128xf32>
    %12 = arith.index_cast %c1_i32 : i32 to index
    %c0_8 = arith.constant 0 : index
    %c0_9 = arith.constant 0 : index
    %13 = vector.load %arg2[%12, %c0_8, %c0_9] : memref<16x8x128xf32, #tpu.memory_space<vmem>>, vector<1x8x128xf32>
    %14 = vector.shape_cast %13 : vector<1x8x128xf32> to vector<8x128xf32>
    %15 = arith.addf %11, %14 : vector<8x128xf32>
    %16 = math.tanh %15 : vector<8x128xf32>
    %c2_i32 = arith.constant 2 : i32
    %cst_10 = arith.constant dense<0.000000e+00> : vector<8x128xf32>
    %17 = tpu.matmul %16, %3, %cst_10 {dimension_numbers = #tpu.dot_dimension_numbers<[1], [0], [0], [1], [0, 0, 1, 1], [], []>} : vector<8x128xf32>, vector<128x128xf32>, vector<8x128xf32> -> vector<8x128xf32>
    %18 = arith.index_cast %c2_i32 : i32 to index
    %c0_11 = arith.constant 0 : index
    %c0_12 = arith.constant 0 : index
    %19 = vector.load %arg2[%18, %c0_11, %c0_12] : memref<16x8x128xf32, #tpu.memory_space<vmem>>, vector<1x8x128xf32>
    %20 = vector.shape_cast %19 : vector<1x8x128xf32> to vector<8x128xf32>
    %21 = arith.addf %17, %20 : vector<8x128xf32>
    %22 = math.tanh %21 : vector<8x128xf32>
    %c3_i32 = arith.constant 3 : i32
    %cst_13 = arith.constant dense<0.000000e+00> : vector<8x128xf32>
    %23 = tpu.matmul %22, %3, %cst_13 {dimension_numbers = #tpu.dot_dimension_numbers<[1], [0], [0], [1], [0, 0, 1, 1], [], []>} : vector<8x128xf32>, vector<128x128xf32>, vector<8x128xf32> -> vector<8x128xf32>
    %24 = arith.index_cast %c3_i32 : i32 to index
    %c0_14 = arith.constant 0 : index
    %c0_15 = arith.constant 0 : index
    %25 = vector.load %arg2[%24, %c0_14, %c0_15] : memref<16x8x128xf32, #tpu.memory_space<vmem>>, vector<1x8x128xf32>
    %26 = vector.shape_cast %25 : vector<1x8x128xf32> to vector<8x128xf32>
    %27 = arith.addf %23, %26 : vector<8x128xf32>
    %28 = math.tanh %27 : vector<8x128xf32>
    %c4_i32 = arith.constant 4 : i32
    %cst_16 = arith.constant dense<0.000000e+00> : vector<8x128xf32>
    %29 = tpu.matmul %28, %3, %cst_16 {dimension_numbers = #tpu.dot_dimension_numbers<[1], [0], [0], [1], [0, 0, 1, 1], [], []>} : vector<8x128xf32>, vector<128x128xf32>, vector<8x128xf32> -> vector<8x128xf32>
    %30 = arith.index_cast %c4_i32 : i32 to index
    %c0_17 = arith.constant 0 : index
    %c0_18 = arith.constant 0 : index
    %31 = vector.load %arg2[%30, %c0_17, %c0_18] : memref<16x8x128xf32, #tpu.memory_space<vmem>>, vector<1x8x128xf32>
    %32 = vector.shape_cast %31 : vector<1x8x128xf32> to vector<8x128xf32>
    %33 = arith.addf %29, %32 : vector<8x128xf32>
    %34 = math.tanh %33 : vector<8x128xf32>
    %c5_i32 = arith.constant 5 : i32
    %cst_19 = arith.constant dense<0.000000e+00> : vector<8x128xf32>
    %35 = tpu.matmul %34, %3, %cst_19 {dimension_numbers = #tpu.dot_dimension_numbers<[1], [0], [0], [1], [0, 0, 1, 1], [], []>} : vector<8x128xf32>, vector<128x128xf32>, vector<8x128xf32> -> vector<8x128xf32>
    %36 = arith.index_cast %c5_i32 : i32 to index
    %c0_20 = arith.constant 0 : index
    %c0_21 = arith.constant 0 : index
    %37 = vector.load %arg2[%36, %c0_20, %c0_21] : memref<16x8x128xf32, #tpu.memory_space<vmem>>, vector<1x8x128xf32>
    %38 = vector.shape_cast %37 : vector<1x8x128xf32> to vector<8x128xf32>
    %39 = arith.addf %35, %38 : vector<8x128xf32>
    %40 = math.tanh %39 : vector<8x128xf32>
    %c6_i32 = arith.constant 6 : i32
    %cst_22 = arith.constant dense<0.000000e+00> : vector<8x128xf32>
    %41 = tpu.matmul %40, %3, %cst_22 {dimension_numbers = #tpu.dot_dimension_numbers<[1], [0], [0], [1], [0, 0, 1, 1], [], []>} : vector<8x128xf32>, vector<128x128xf32>, vector<8x128xf32> -> vector<8x128xf32>
    %42 = arith.index_cast %c6_i32 : i32 to index
    %c0_23 = arith.constant 0 : index
    %c0_24 = arith.constant 0 : index
    %43 = vector.load %arg2[%42, %c0_23, %c0_24] : memref<16x8x128xf32, #tpu.memory_space<vmem>>, vector<1x8x128xf32>
    %44 = vector.shape_cast %43 : vector<1x8x128xf32> to vector<8x128xf32>
    %45 = arith.addf %41, %44 : vector<8x128xf32>
    %46 = math.tanh %45 : vector<8x128xf32>
    %c7_i32 = arith.constant 7 : i32
    %cst_25 = arith.constant dense<0.000000e+00> : vector<8x128xf32>
    %47 = tpu.matmul %46, %3, %cst_25 {dimension_numbers = #tpu.dot_dimension_numbers<[1], [0], [0], [1], [0, 0, 1, 1], [], []>} : vector<8x128xf32>, vector<128x128xf32>, vector<8x128xf32> -> vector<8x128xf32>
    %48 = arith.index_cast %c7_i32 : i32 to index
    %c0_26 = arith.constant 0 : index
    %c0_27 = arith.constant 0 : index
    %49 = vector.load %arg2[%48, %c0_26, %c0_27] : memref<16x8x128xf32, #tpu.memory_space<vmem>>, vector<1x8x128xf32>
    %50 = vector.shape_cast %49 : vector<1x8x128xf32> to vector<8x128xf32>
    %51 = arith.addf %47, %50 : vector<8x128xf32>
    %52 = math.tanh %51 : vector<8x128xf32>
    %c8_i32 = arith.constant 8 : i32
    %cst_28 = arith.constant dense<0.000000e+00> : vector<8x128xf32>
    %53 = tpu.matmul %52, %3, %cst_28 {dimension_numbers = #tpu.dot_dimension_numbers<[1], [0], [0], [1], [0, 0, 1, 1], [], []>} : vector<8x128xf32>, vector<128x128xf32>, vector<8x128xf32> -> vector<8x128xf32>
    %54 = arith.index_cast %c8_i32 : i32 to index
    %c0_29 = arith.constant 0 : index
    %c0_30 = arith.constant 0 : index
    %55 = vector.load %arg2[%54, %c0_29, %c0_30] : memref<16x8x128xf32, #tpu.memory_space<vmem>>, vector<1x8x128xf32>
    %56 = vector.shape_cast %55 : vector<1x8x128xf32> to vector<8x128xf32>
    %57 = arith.addf %53, %56 : vector<8x128xf32>
    %58 = math.tanh %57 : vector<8x128xf32>
    %c9_i32 = arith.constant 9 : i32
    %cst_31 = arith.constant dense<0.000000e+00> : vector<8x128xf32>
    %59 = tpu.matmul %58, %3, %cst_31 {dimension_numbers = #tpu.dot_dimension_numbers<[1], [0], [0], [1], [0, 0, 1, 1], [], []>} : vector<8x128xf32>, vector<128x128xf32>, vector<8x128xf32> -> vector<8x128xf32>
    %60 = arith.index_cast %c9_i32 : i32 to index
    %c0_32 = arith.constant 0 : index
    %c0_33 = arith.constant 0 : index
    %61 = vector.load %arg2[%60, %c0_32, %c0_33] : memref<16x8x128xf32, #tpu.memory_space<vmem>>, vector<1x8x128xf32>
    %62 = vector.shape_cast %61 : vector<1x8x128xf32> to vector<8x128xf32>
    %63 = arith.addf %59, %62 : vector<8x128xf32>
    %64 = math.tanh %63 : vector<8x128xf32>
    %c10_i32 = arith.constant 10 : i32
    %cst_34 = arith.constant dense<0.000000e+00> : vector<8x128xf32>
    %65 = tpu.matmul %64, %3, %cst_34 {dimension_numbers = #tpu.dot_dimension_numbers<[1], [0], [0], [1], [0, 0, 1, 1], [], []>} : vector<8x128xf32>, vector<128x128xf32>, vector<8x128xf32> -> vector<8x128xf32>
    %66 = arith.index_cast %c10_i32 : i32 to index
    %c0_35 = arith.constant 0 : index
    %c0_36 = arith.constant 0 : index
    %67 = vector.load %arg2[%66, %c0_35, %c0_36] : memref<16x8x128xf32, #tpu.memory_space<vmem>>, vector<1x8x128xf32>
    %68 = vector.shape_cast %67 : vector<1x8x128xf32> to vector<8x128xf32>
    %69 = arith.addf %65, %68 : vector<8x128xf32>
    %70 = math.tanh %69 : vector<8x128xf32>
    %c11_i32 = arith.constant 11 : i32
    %cst_37 = arith.constant dense<0.000000e+00> : vector<8x128xf32>
    %71 = tpu.matmul %70, %3, %cst_37 {dimension_numbers = #tpu.dot_dimension_numbers<[1], [0], [0], [1], [0, 0, 1, 1], [], []>} : vector<8x128xf32>, vector<128x128xf32>, vector<8x128xf32> -> vector<8x128xf32>
    %72 = arith.index_cast %c11_i32 : i32 to index
    %c0_38 = arith.constant 0 : index
    %c0_39 = arith.constant 0 : index
    %73 = vector.load %arg2[%72, %c0_38, %c0_39] : memref<16x8x128xf32, #tpu.memory_space<vmem>>, vector<1x8x128xf32>
    %74 = vector.shape_cast %73 : vector<1x8x128xf32> to vector<8x128xf32>
    %75 = arith.addf %71, %74 : vector<8x128xf32>
    %76 = math.tanh %75 : vector<8x128xf32>
    %c12_i32 = arith.constant 12 : i32
    %cst_40 = arith.constant dense<0.000000e+00> : vector<8x128xf32>
    %77 = tpu.matmul %76, %3, %cst_40 {dimension_numbers = #tpu.dot_dimension_numbers<[1], [0], [0], [1], [0, 0, 1, 1], [], []>} : vector<8x128xf32>, vector<128x128xf32>, vector<8x128xf32> -> vector<8x128xf32>
    %78 = arith.index_cast %c12_i32 : i32 to index
    %c0_41 = arith.constant 0 : index
    %c0_42 = arith.constant 0 : index
    %79 = vector.load %arg2[%78, %c0_41, %c0_42] : memref<16x8x128xf32, #tpu.memory_space<vmem>>, vector<1x8x128xf32>
    %80 = vector.shape_cast %79 : vector<1x8x128xf32> to vector<8x128xf32>
    %81 = arith.addf %77, %80 : vector<8x128xf32>
    %82 = math.tanh %81 : vector<8x128xf32>
    %c13_i32 = arith.constant 13 : i32
    %cst_43 = arith.constant dense<0.000000e+00> : vector<8x128xf32>
    %83 = tpu.matmul %82, %3, %cst_43 {dimension_numbers = #tpu.dot_dimension_numbers<[1], [0], [0], [1], [0, 0, 1, 1], [], []>} : vector<8x128xf32>, vector<128x128xf32>, vector<8x128xf32> -> vector<8x128xf32>
    %84 = arith.index_cast %c13_i32 : i32 to index
    %c0_44 = arith.constant 0 : index
    %c0_45 = arith.constant 0 : index
    %85 = vector.load %arg2[%84, %c0_44, %c0_45] : memref<16x8x128xf32, #tpu.memory_space<vmem>>, vector<1x8x128xf32>
    %86 = vector.shape_cast %85 : vector<1x8x128xf32> to vector<8x128xf32>
    %87 = arith.addf %83, %86 : vector<8x128xf32>
    %88 = math.tanh %87 : vector<8x128xf32>
    %c14_i32 = arith.constant 14 : i32
    %cst_46 = arith.constant dense<0.000000e+00> : vector<8x128xf32>
    %89 = tpu.matmul %88, %3, %cst_46 {dimension_numbers = #tpu.dot_dimension_numbers<[1], [0], [0], [1], [0, 0, 1, 1], [], []>} : vector<8x128xf32>, vector<128x128xf32>, vector<8x128xf32> -> vector<8x128xf32>
    %90 = arith.index_cast %c14_i32 : i32 to index
    %c0_47 = arith.constant 0 : index
    %c0_48 = arith.constant 0 : index
    %91 = vector.load %arg2[%90, %c0_47, %c0_48] : memref<16x8x128xf32, #tpu.memory_space<vmem>>, vector<1x8x128xf32>
    %92 = vector.shape_cast %91 : vector<1x8x128xf32> to vector<8x128xf32>
    %93 = arith.addf %89, %92 : vector<8x128xf32>
    %94 = math.tanh %93 : vector<8x128xf32>
    %c15_i32 = arith.constant 15 : i32
    %cst_49 = arith.constant dense<0.000000e+00> : vector<8x128xf32>
    %95 = tpu.matmul %94, %3, %cst_49 {dimension_numbers = #tpu.dot_dimension_numbers<[1], [0], [0], [1], [0, 0, 1, 1], [], []>} : vector<8x128xf32>, vector<128x128xf32>, vector<8x128xf32> -> vector<8x128xf32>
    %96 = arith.index_cast %c15_i32 : i32 to index
    %c0_50 = arith.constant 0 : index
    %c0_51 = arith.constant 0 : index
    %97 = vector.load %arg2[%96, %c0_50, %c0_51] : memref<16x8x128xf32, #tpu.memory_space<vmem>>, vector<1x8x128xf32>
    %98 = vector.shape_cast %97 : vector<1x8x128xf32> to vector<8x128xf32>
    %99 = arith.addf %95, %98 : vector<8x128xf32>
    %100 = math.tanh %99 : vector<8x128xf32>
    %c16_i32 = arith.constant 16 : i32
    %c0_52 = arith.constant 0 : index
    %c0_53 = arith.constant 0 : index
    %101 = vector.load %arg4[%c0_52, %c0_53] : memref<8x128xf32, #tpu.memory_space<vmem>>, vector<8x128xf32>
    tpu.vector_store %arg4[%c0_52, %c0_53], %100 {strides = array<i32>} : memref<8x128xf32, #tpu.memory_space<vmem>>, vector<8x128xf32>,
    return
  }
  func.func @transform_0(%arg0: i32, %arg1: i32) -> (i32, i32, i32) {
    %c0_i32 = arith.constant 0 : i32
    %c0_i32_0 = arith.constant 0 : i32
    return %arg1, %arg0, %c0_i32 : i32, i32, i32
  }
  func.func @transform_1(%arg0: i32, %arg1: i32) -> (i32, i32) {
    %c0_i32 = arith.constant 0 : i32
    %c0_i32_0 = arith.constant 0 : i32
    %c0_i32_1 = arith.constant 0 : i32
    return %c0_i32, %c0_i32_0 : i32, i32
  }
  func.func @transform_2(%arg0: i32, %arg1: i32) -> (i32, i32) {
    %c0_i32 = arith.constant 0 : i32
    %c0_i32_0 = arith.constant 0 : i32
    return %arg0, %c0_i32 : i32, i32
  }
}

</mosaic_0001>

<llo_original>
// kernel: tpu_custom_call.1
$region0: #{tpu_custom_call.1}
  #allocation0 [shape = 'u32[]', space=smem, size = 0x4, offset = 0x4, fixed_abs, tag = 'smem constant byte address 0x4 - core index']
  #allocation1 [shape = 'u32[72,128]{1,0:T(1,128)}', space=vmem, size = 0x9000, scoped, tag = 'internal scratch']
  %s0 = inlined_call_operand.hbm [shape: f32[16,8,128], index: 0, kind: input, shape index: {}]
  %s1 = inlined_call_operand.hbm [shape: f32[128,128], index: 1, kind: input, shape index: {}]
  %s2 = inlined_call_operand.hbm [shape: f32[8,128], index: 2, kind: output, shape index: {}]
  %s3 = sld [smem:[#allocation0]]
  $region30: #{tpu_custom_call.1} parent=0
    _
  %s5 = ssub.s32 1, %s3
  %s6 = scalar_select 0, %s5, %s3
  $region1: #{tpu_custom_call.1} parent=0
    #allocation2 [shape = 'u8[65536]{0}', space=vmem, size = 0x10000, scoped, tag = 'input window, operand 0, single buffered']
    #allocation3 [shape = 's32[1]{0}', space=sflag, size = 0x4, scoped, tag = 'scoped memory for tpu_custom_call.1']
    #allocation4 [shape = 's32[1]{0}', space=sflag, size = 0x4, scoped, tag = 'scoped memory for tpu_custom_call.1']
    #allocation5 [shape = 'u8[65536]{0}', space=vmem, size = 0x10000, scoped, tag = 'input window, operand 1, single buffered']
    #allocation6 [shape = 's32[1]{0}', space=sflag, size = 0x4, scoped, tag = 'scoped memory for tpu_custom_call.1']
    #allocation7 [shape = 'u8[4096]{0}', space=vmem, size = 0x1000, scoped, tag = 'output window, operand 0, single buffered']
    %7 = vsyncpa [#allocation3], 0
    %8 = vsyncpa [#allocation6], 0
    %9 = vsyncpa [#allocation4], 0
    // Predicated region
    $region2: #{tpu_custom_call.1} parent=1 // pred_check
      _
    $region3: #{tpu_custom_call.1} parent=1 // pred_check_branch
      %11 = sbr.rel (0) target = $region5
    $region4: #{tpu_custom_call.1} parent=1 // pred_region
      %13 = vsyncadd [#allocation3], 0
      %s14 = sshll.u32 %s0, 4
      %s15 = int_to_ptr.hbm [resolvable:$true] %s14
      %s16 = sshll.u32 [#allocation2], 4
      %s17 = int_to_ptr.vmem [resolvable:$true] %s16
      %22 = dma.hbm_to_vmem [thread:$0]  %s15, 2048, %s17, [#allocation3], 128, 128, 8
    $region5: #{tpu_custom_call.1} parent=1 // pred_fallthru
      _
    // Predicated region
    $region6: #{tpu_custom_call.1} parent=1 // pred_check
      _
    $region7: #{tpu_custom_call.1} parent=1 // pred_check_branch
      %24 = sbr.rel (0) target = $region9
    $region8: #{tpu_custom_call.1} parent=1 // pred_region
      %26 = vsyncadd [#allocation6], 0
      %s27 = sshll.u32 %s1, 4
      %s28 = int_to_ptr.hbm [resolvable:$true] %s27
      %s29 = sshll.u32 [#allocation5], 4
      %s30 = int_to_ptr.vmem [resolvable:$true] %s29
      %35 = dma.hbm_to_vmem [thread:$0]  %s28, 2048, %s30, [#allocation6], 128, 128, 8
    $region9: #{tpu_custom_call.1} parent=1 // pred_fallthru
      _
    // Predicated region
    $region10: #{tpu_custom_call.1} parent=1 // pred_check
      _
    $region11: #{tpu_custom_call.1} parent=1 // pred_check_branch
      %37 = sbr.rel (0) target = $region13
    $region12: #{tpu_custom_call.1} parent=1 // pred_region
      %39 = dma.done [#allocation3], 2048
    $region13: #{tpu_custom_call.1} parent=1 // pred_fallthru
      _
    // Predicated region
    $region14: #{tpu_custom_call.1} parent=1 // pred_check
      _
    $region15: #{tpu_custom_call.1} parent=1 // pred_check_branch
      %41 = sbr.rel (0) target = $region17
    $region16: #{tpu_custom_call.1} parent=1 // pred_region
      %43 = dma.done [#allocation6], 2048
    $region17: #{tpu_custom_call.1} parent=1 // pred_fallthru
      _
    %p44 = scmp.eq.s32.totalorder 0, 0
    // Predicated region
    $region18: #{tpu_custom_call.1} parent=1 // pred_check
      %p45 = pneg %p44
    $region19: #{tpu_custom_call.1} parent=1 // pred_check_branch
      %47 = sbr.rel (%p45) target = $region21
    $region20: #{tpu_custom_call.1} parent=1 // pred_region
      %48 = vst [vmem:[#allocation7] sm:$0xff] 0.0
    $region21: #{tpu_custom_call.1} parent=1 // pred_fallthru
      _
    %v49 = vld [vmem:[#allocation5] sm:$0xff]
    %v50 = vld [vmem:[#allocation5 + $0x8] sm:$0xff]
    %v51 = vld [vmem:[#allocation5 + $0x10] sm:$0xff]
    %v52 = vld [vmem:[#allocation5 + $0x18] sm:$0xff]
    %v53 = vld [vmem:[#allocation5 + $0x20] sm:$0xff]
    %v54 = vld [vmem:[#allocation5 + $0x28] sm:$0xff]
    %v55 = vld [vmem:[#allocation5 + $0x30] sm:$0xff]
    %v56 = vld [vmem:[#allocation5 + $0x38] sm:$0xff]
    %v57 = vld [vmem:[#allocation5 + $0x40] sm:$0xff]
    %v58 = vld [vmem:[#allocation5 + $0x48] sm:$0xff]
    %v59 = vld [vmem:[#allocation5 + $0x50] sm:$0xff]
    %v60 = vld [vmem:[#allocation5 + $0x58] sm:$0xff]
    %v61 = vld [vmem:[#allocation5 + $0x60] sm:$0xff]
    %v62 = vld [vmem:[#allocation5 + $0x68] sm:$0xff]
    %v63 = vld [vmem:[#allocation5 + $0x70] sm:$0xff]
    %v64 = vld [vmem:[#allocation5 + $0x78] sm:$0xff]
    %v65 = vld [vmem:[#allocation7] sm:$0xff]
    %v66 = vld [vmem:[#allocation2] sm:$0xff]
    %67 = vmatpush.msra.mxu0 %v64
    %68 = vmatpush.msra.mxu0 %v63
    %69 = vmatpush.msra.mxu0 %v62
    %70 = vmatpush.msra.mxu0 %v61
    %71 = vmatpush.msra.mxu0 %v60
    %72 = vmatpush.msra.mxu0 %v59
    %73 = vmatpush.msra.mxu0 %v58
    %74 = vmatpush.msra.mxu0 %v57
    %75 = vmatpush.msra.mxu0 %v56
    %76 = vmatpush.msra.mxu0 %v55
    %77 = vmatpush.msra.mxu0 %v54
    %78 = vmatpush.msra.mxu0 %v53
    %79 = vmatpush.msra.mxu0 %v52
    %80 = vmatpush.msra.mxu0 %v51
    %81 = vmatpush.msra.mxu0 %v50
    %82 = vmatpush.msra.mxu0 %v49
    %83 = vmatmul.f32.gmra.mxu0 %v65
    %v84 = vpop.f32.mrf.mxu0
    %v85 = vadd.f32 %v66, %v84
    %86 = vdwg.mxu0
    %v87 = vtanh.pop %v85
    %s88 = scalar_lea.vmem [#allocation2], 8
    %v89 = vld [vmem:[%s88] sm:$0xff]
    %90 = vmatpush.msra.mxu0 %v64
    %91 = vmatpush.msra.mxu0 %v63
    %92 = vmatpush.msra.mxu0 %v62
    %93 = vmatpush.msra.mxu0 %v61
    %94 = vmatpush.msra.mxu0 %v60
    %95 = vmatpush.msra.mxu0 %v59
    %96 = vmatpush.msra.mxu0 %v58
    %97 = vmatpush.msra.mxu0 %v57
    %98 = vmatpush.msra.mxu0 %v56
    %99 = vmatpush.msra.mxu0 %v55
    %100 = vmatpush.msra.mxu0 %v54
    %101 = vmatpush.msra.mxu0 %v53
    %102 = vmatpush.msra.mxu0 %v52
    %103 = vmatpush.msra.mxu0 %v51
    %104 = vmatpush.msra.mxu0 %v50
    %105 = vmatpush.msra.mxu0 %v49
    %106 = vmatmul.f32.gmra.mxu0 %v87
    %v107 = vpop.f32.mrf.mxu0
    %v108 = vadd.f32 %v89, %v107
    %109 = vdwg.mxu0
    %v110 = vtanh.pop %v108
    %s111 = scalar_lea.vmem [#allocation2], 16
    %v112 = vld [vmem:[%s111] sm:$0xff]
    %113 = vmatpush.msra.mxu0 %v64
    %114 = vmatpush.msra.mxu0 %v63
    %115 = vmatpush.msra.mxu0 %v62
    %116 = vmatpush.msra.mxu0 %v61
    %117 = vmatpush.msra.mxu0 %v60
    %118 = vmatpush.msra.mxu0 %v59
    %119 = vmatpush.msra.mxu0 %v58
    %120 = vmatpush.msra.mxu0 %v57
    %121 = vmatpush.msra.mxu0 %v56
    %122 = vmatpush.msra.mxu0 %v55
    %123 = vmatpush.msra.mxu0 %v54
    %124 = vmatpush.msra.mxu0 %v53
    %125 = vmatpush.msra.mxu0 %v52
    %126 = vmatpush.msra.mxu0 %v51
    %127 = vmatpush.msra.mxu0 %v50
    %128 = vmatpush.msra.mxu0 %v49
    %129 = vmatmul.f32.gmra.mxu0 %v110
    %v130 = vpop.f32.mrf.mxu0
    %v131 = vadd.f32 %v112, %v130
    %132 = vdwg.mxu0
    %v133 = vtanh.pop %v131
    %s134 = scalar_lea.vmem [#allocation2], 24
    %v135 = vld [vmem:[%s134] sm:$0xff]
    %136 = vmatpush.msra.mxu0 %v64
    %137 = vmatpush.msra.mxu0 %v63
    %138 = vmatpush.msra.mxu0 %v62
    %139 = vmatpush.msra.mxu0 %v61
    %140 = vmatpush.msra.mxu0 %v60
    %141 = vmatpush.msra.mxu0 %v59
    %142 = vmatpush.msra.mxu0 %v58
    %143 = vmatpush.msra.mxu0 %v57
    %144 = vmatpush.msra.mxu0 %v56
    %145 = vmatpush.msra.mxu0 %v55
    %146 = vmatpush.msra.mxu0 %v54
    %147 = vmatpush.msra.mxu0 %v53
    %148 = vmatpush.msra.mxu0 %v52
    %149 = vmatpush.msra.mxu0 %v51
    %150 = vmatpush.msra.mxu0 %v50
    %151 = vmatpush.msra.mxu0 %v49
    %152 = vmatmul.f32.gmra.mxu0 %v133
    %v153 = vpop.f32.mrf.mxu0
    %v154 = vadd.f32 %v135, %v153
    %155 = vdwg.mxu0
    %v156 = vtanh.pop %v154
    %s157 = scalar_lea.vmem [#allocation2], 32
    %v158 = vld [vmem:[%s157] sm:$0xff]
    %159 = vmatpush.msra.mxu0 %v64
    %160 = vmatpush.msra.mxu0 %v63
    %161 = vmatpush.msra.mxu0 %v62
    %162 = vmatpush.msra.mxu0 %v61
    %163 = vmatpush.msra.mxu0 %v60
    %164 = vmatpush.msra.mxu0 %v59
    %165 = vmatpush.msra.mxu0 %v58
    %166 = vmatpush.msra.mxu0 %v57
    %167 = vmatpush.msra.mxu0 %v56
    %168 = vmatpush.msra.mxu0 %v55
    %169 = vmatpush.msra.mxu0 %v54
    %170 = vmatpush.msra.mxu0 %v53
    %171 = vmatpush.msra.mxu0 %v52
    %172 = vmatpush.msra.mxu0 %v51
    %173 = vmatpush.msra.mxu0 %v50
    %174 = vmatpush.msra.mxu0 %v49
    %175 = vmatmul.f32.gmra.mxu0 %v156
    %v176 = vpop.f32.mrf.mxu0
    %v177 = vadd.f32 %v158, %v176
    %178 = vdwg.mxu0
    %v179 = vtanh.pop %v177
    %s180 = scalar_lea.vmem [#allocation2], 40
    %v181 = vld [vmem:[%s180] sm:$0xff]
    %182 = vmatpush.msra.mxu0 %v64
    %183 = vmatpush.msra.mxu0 %v63
    %184 = vmatpush.msra.mxu0 %v62
    %185 = vmatpush.msra.mxu0 %v61
    %186 = vmatpush.msra.mxu0 %v60
    %187 = vmatpush.msra.mxu0 %v59
    %188 = vmatpush.msra.mxu0 %v58
    %189 = vmatpush.msra.mxu0 %v57
    %190 = vmatpush.msra.mxu0 %v56
    %191 = vmatpush.msra.mxu0 %v55
    %192 = vmatpush.msra.mxu0 %v54
    %193 = vmatpush.msra.mxu0 %v53
    %194 = vmatpush.msra.mxu0 %v52
    %195 = vmatpush.msra.mxu0 %v51
    %196 = vmatpush.msra.mxu0 %v50
    %197 = vmatpush.msra.mxu0 %v49
    %198 = vmatmul.f32.gmra.mxu0 %v179
    %v199 = vpop.f32.mrf.mxu0
    %v200 = vadd.f32 %v181, %v199
    %201 = vdwg.mxu0
    %v202 = vtanh.pop %v200
    %s203 = scalar_lea.vmem [#allocation2], 48
    %v204 = vld [vmem:[%s203] sm:$0xff]
    %205 = vmatpush.msra.mxu0 %v64
    %206 = vmatpush.msra.mxu0 %v63
    %207 = vmatpush.msra.mxu0 %v62
    %208 = vmatpush.msra.mxu0 %v61
    %209 = vmatpush.msra.mxu0 %v60
    %210 = vmatpush.msra.mxu0 %v59
    %211 = vmatpush.msra.mxu0 %v58
    %212 = vmatpush.msra.mxu0 %v57
    %213 = vmatpush.msra.mxu0 %v56
    %214 = vmatpush.msra.mxu0 %v55
    %215 = vmatpush.msra.mxu0 %v54
    %216 = vmatpush.msra.mxu0 %v53
    %217 = vmatpush.msra.mxu0 %v52
    %218 = vmatpush.msra.mxu0 %v51
    %219 = vmatpush.msra.mxu0 %v50
    %220 = vmatpush.msra.mxu0 %v49
    %221 = vmatmul.f32.gmra.mxu0 %v202
    %v222 = vpop.f32.mrf.mxu0
    %v223 = vadd.f32 %v204, %v222
    %224 = vdwg.mxu0
    %v225 = vtanh.pop %v223
    %s226 = scalar_lea.vmem [#allocation2], 56
    %v227 = vld [vmem:[%s226] sm:$0xff]
    %228 = vmatpush.msra.mxu0 %v64
    %229 = vmatpush.msra.mxu0 %v63
    %230 = vmatpush.msra.mxu0 %v62
    %231 = vmatpush.msra.mxu0 %v61
    %232 = vmatpush.msra.mxu0 %v60
    %233 = vmatpush.msra.mxu0 %v59
    %234 = vmatpush.msra.mxu0 %v58
    %235 = vmatpush.msra.mxu0 %v57
    %236 = vmatpush.msra.mxu0 %v56
    %237 = vmatpush.msra.mxu0 %v55
    %238 = vmatpush.msra.mxu0 %v54
    %239 = vmatpush.msra.mxu0 %v53
    %240 = vmatpush.msra.mxu0 %v52
    %241 = vmatpush.msra.mxu0 %v51
    %242 = vmatpush.msra.mxu0 %v50
    %243 = vmatpush.msra.mxu0 %v49
    %244 = vmatmul.f32.gmra.mxu0 %v225
    %v245 = vpop.f32.mrf.mxu0
    %v246 = vadd.f32 %v227, %v245
    %247 = vdwg.mxu0
    %v248 = vtanh.pop %v246
    %s249 = scalar_lea.vmem [#allocation2], 64
    %v250 = vld [vmem:[%s249] sm:$0xff]
    %251 = vmatpush.msra.mxu0 %v64
    %252 = vmatpush.msra.mxu0 %v63
    %253 = vmatpush.msra.mxu0 %v62
    %254 = vmatpush.msra.mxu0 %v61
    %255 = vmatpush.msra.mxu0 %v60
    %256 = vmatpush.msra.mxu0 %v59
    %257 = vmatpush.msra.mxu0 %v58
    %258 = vmatpush.msra.mxu0 %v57
    %259 = vmatpush.msra.mxu0 %v56
    %260 = vmatpush.msra.mxu0 %v55
    %261 = vmatpush.msra.mxu0 %v54
    %262 = vmatpush.msra.mxu0 %v53
    %263 = vmatpush.msra.mxu0 %v52
    %264 = vmatpush.msra.mxu0 %v51
    %265 = vmatpush.msra.mxu0 %v50
    %266 = vmatpush.msra.mxu0 %v49
    %267 = vmatmul.f32.gmra.mxu0 %v248
    %v268 = vpop.f32.mrf.mxu0
    %v269 = vadd.f32 %v250, %v268
    %270 = vdwg.mxu0
    %v271 = vtanh.pop %v269
    %s272 = scalar_lea.vmem [#allocation2], 72
    %v273 = vld [vmem:[%s272] sm:$0xff]
    %274 = vmatpush.msra.mxu0 %v64
    %275 = vmatpush.msra.mxu0 %v63
    %276 = vmatpush.msra.mxu0 %v62
    %277 = vmatpush.msra.mxu0 %v61
    %278 = vmatpush.msra.mxu0 %v60
    %279 = vmatpush.msra.mxu0 %v59
    %280 = vmatpush.msra.mxu0 %v58
    %281 = vmatpush.msra.mxu0 %v57
    %282 = vmatpush.msra.mxu0 %v56
    %283 = vmatpush.msra.mxu0 %v55
    %284 = vmatpush.msra.mxu0 %v54
    %285 = vmatpush.msra.mxu0 %v53
    %286 = vmatpush.msra.mxu0 %v52
    %287 = vmatpush.msra.mxu0 %v51
    %288 = vmatpush.msra.mxu0 %v50
    %289 = vmatpush.msra.mxu0 %v49
    %290 = vmatmul.f32.gmra.mxu0 %v271
    %v291 = vpop.f32.mrf.mxu0
    %v292 = vadd.f32 %v273, %v291
    %293 = vdwg.mxu0
    %v294 = vtanh.pop %v292
    %s295 = scalar_lea.vmem [#allocation2], 80
    %v296 = vld [vmem:[%s295] sm:$0xff]
    %297 = vmatpush.msra.mxu0 %v64
    %298 = vmatpush.msra.mxu0 %v63
    %299 = vmatpush.msra.mxu0 %v62
    %300 = vmatpush.msra.mxu0 %v61
    %301 = vmatpush.msra.mxu0 %v60
    %302 = vmatpush.msra.mxu0 %v59
    %303 = vmatpush.msra.mxu0 %v58
    %304 = vmatpush.msra.mxu0 %v57
    %305 = vmatpush.msra.mxu0 %v56
    %306 = vmatpush.msra.mxu0 %v55
    %307 = vmatpush.msra.mxu0 %v54
    %308 = vmatpush.msra.mxu0 %v53
    %309 = vmatpush.msra.mxu0 %v52
    %310 = vmatpush.msra.mxu0 %v51
    %311 = vmatpush.msra.mxu0 %v50
    %312 = vmatpush.msra.mxu0 %v49
    %313 = vmatmul.f32.gmra.mxu0 %v294
    %v314 = vpop.f32.mrf.mxu0
    %v315 = vadd.f32 %v296, %v314
    %316 = vdwg.mxu0
    %v317 = vtanh.pop %v315
    %s318 = scalar_lea.vmem [#allocation2], 88
    %v319 = vld [vmem:[%s318] sm:$0xff]
    %320 = vmatpush.msra.mxu0 %v64
    %321 = vmatpush.msra.mxu0 %v63
    %322 = vmatpush.msra.mxu0 %v62
    %323 = vmatpush.msra.mxu0 %v61
    %324 = vmatpush.msra.mxu0 %v60
    %325 = vmatpush.msra.mxu0 %v59
    %326 = vmatpush.msra.mxu0 %v58
    %327 = vmatpush.msra.mxu0 %v57
    %328 = vmatpush.msra.mxu0 %v56
    %329 = vmatpush.msra.mxu0 %v55
    %330 = vmatpush.msra.mxu0 %v54
    %331 = vmatpush.msra.mxu0 %v53
    %332 = vmatpush.msra.mxu0 %v52
    %333 = vmatpush.msra.mxu0 %v51
    %334 = vmatpush.msra.mxu0 %v50
    %335 = vmatpush.msra.mxu0 %v49
    %336 = vmatmul.f32.gmra.mxu0 %v317
    %v337 = vpop.f32.mrf.mxu0
    %v338 = vadd.f32 %v319, %v337
    %339 = vdwg.mxu0
    %v340 = vtanh.pop %v338
    %s341 = scalar_lea.vmem [#allocation2], 96
    %v342 = vld [vmem:[%s341] sm:$0xff]
    %343 = vmatpush.msra.mxu0 %v64
    %344 = vmatpush.msra.mxu0 %v63
    %345 = vmatpush.msra.mxu0 %v62
    %346 = vmatpush.msra.mxu0 %v61
    %347 = vmatpush.msra.mxu0 %v60
    %348 = vmatpush.msra.mxu0 %v59
    %349 = vmatpush.msra.mxu0 %v58
    %350 = vmatpush.msra.mxu0 %v57
    %351 = vmatpush.msra.mxu0 %v56
    %352 = vmatpush.msra.mxu0 %v55
    %353 = vmatpush.msra.mxu0 %v54
    %354 = vmatpush.msra.mxu0 %v53
    %355 = vmatpush.msra.mxu0 %v52
    %356 = vmatpush.msra.mxu0 %v51
    %357 = vmatpush.msra.mxu0 %v50
    %358 = vmatpush.msra.mxu0 %v49
    %359 = vmatmul.f32.gmra.mxu0 %v340
    %v360 = vpop.f32.mrf.mxu0
    %v361 = vadd.f32 %v342, %v360
    %362 = vdwg.mxu0
    %v363 = vtanh.pop %v361
    %s364 = scalar_lea.vmem [#allocation2], 104
    %v365 = vld [vmem:[%s364] sm:$0xff]
    %366 = vmatpush.msra.mxu0 %v64
    %367 = vmatpush.msra.mxu0 %v63
    %368 = vmatpush.msra.mxu0 %v62
    %369 = vmatpush.msra.mxu0 %v61
    %370 = vmatpush.msra.mxu0 %v60
    %371 = vmatpush.msra.mxu0 %v59
    %372 = vmatpush.msra.mxu0 %v58
    %373 = vmatpush.msra.mxu0 %v57
    %374 = vmatpush.msra.mxu0 %v56
    %375 = vmatpush.msra.mxu0 %v55
    %376 = vmatpush.msra.mxu0 %v54
    %377 = vmatpush.msra.mxu0 %v53
    %378 = vmatpush.msra.mxu0 %v52
    %379 = vmatpush.msra.mxu0 %v51
    %380 = vmatpush.msra.mxu0 %v50
    %381 = vmatpush.msra.mxu0 %v49
    %382 = vmatmul.f32.gmra.mxu0 %v363
    %v383 = vpop.f32.mrf.mxu0
    %v384 = vadd.f32 %v365, %v383
    %385 = vdwg.mxu0
    %v386 = vtanh.pop %v384
    %s387 = scalar_lea.vmem [#allocation2], 112
    %v388 = vld [vmem:[%s387] sm:$0xff]
    %389 = vmatpush.msra.mxu0 %v64
    %390 = vmatpush.msra.mxu0 %v63
    %391 = vmatpush.msra.mxu0 %v62
    %392 = vmatpush.msra.mxu0 %v61
    %393 = vmatpush.msra.mxu0 %v60
    %394 = vmatpush.msra.mxu0 %v59
    %395 = vmatpush.msra.mxu0 %v58
    %396 = vmatpush.msra.mxu0 %v57
    %397 = vmatpush.msra.mxu0 %v56
    %398 = vmatpush.msra.mxu0 %v55
    %399 = vmatpush.msra.mxu0 %v54
    %400 = vmatpush.msra.mxu0 %v53
    %401 = vmatpush.msra.mxu0 %v52
    %402 = vmatpush.msra.mxu0 %v51
    %403 = vmatpush.msra.mxu0 %v50
    %404 = vmatpush.msra.mxu0 %v49
    %405 = vmatmul.f32.gmra.mxu0 %v386
    %v406 = vpop.f32.mrf.mxu0
    %v407 = vadd.f32 %v388, %v406
    %408 = vdwg.mxu0
    %v409 = vtanh.pop %v407
    %s410 = scalar_lea.vmem [#allocation2], 120
    %v411 = vld [vmem:[%s410] sm:$0xff]
    %412 = vmatpush.msra.mxu0 %v64
    %413 = vmatpush.msra.mxu0 %v63
    %414 = vmatpush.msra.mxu0 %v62
    %415 = vmatpush.msra.mxu0 %v61
    %416 = vmatpush.msra.mxu0 %v60
    %417 = vmatpush.msra.mxu0 %v59
    %418 = vmatpush.msra.mxu0 %v58
    %419 = vmatpush.msra.mxu0 %v57
    %420 = vmatpush.msra.mxu0 %v56
    %421 = vmatpush.msra.mxu0 %v55
    %422 = vmatpush.msra.mxu0 %v54
    %423 = vmatpush.msra.mxu0 %v53
    %424 = vmatpush.msra.mxu0 %v52
    %425 = vmatpush.msra.mxu0 %v51
    %426 = vmatpush.msra.mxu0 %v50
    %427 = vmatpush.msra.mxu0 %v49
    %428 = vmatmul.f32.gmra.mxu0 %v409
    %v429 = vpop.f32.mrf.mxu0
    %v430 = vadd.f32 %v411, %v429
    %431 = vdwg.mxu0
    %v432 = vtanh.pop %v430
    %433 = vst [vmem:[#allocation7] sm:$0xff] %v432
    // Predicated region
    $region22: #{tpu_custom_call.1} parent=1 // pred_check
      _
    $region23: #{tpu_custom_call.1} parent=1 // pred_check_branch
      %435 = sbr.rel (0) target = $region25
    $region24: #{tpu_custom_call.1} parent=1 // pred_region
      %437 = vsyncadd [#allocation4], 0
      %s439 = sshll.u32 [#allocation7], 4
      %s440 = int_to_ptr.vmem [resolvable:$true] %s439
      %s441 = sshll.u32 %s2, 4
      %s442 = int_to_ptr.hbm [resolvable:$true] %s441
      %444 = dma.vmem_to_hbm [thread:$0]  %s440, 128, %s442, [#allocation4]
    $region25: #{tpu_custom_call.1} parent=1 // pred_fallthru
      _
    // Predicated region
    $region26: #{tpu_custom_call.1} parent=1 // pred_check
      _
    $region27: #{tpu_custom_call.1} parent=1 // pred_check_branch
      %446 = sbr.rel (0) target = $region29
    $region28: #{tpu_custom_call.1} parent=1 // pred_region
      %448 = dma.done [#allocation4], 128
    $region29: #{tpu_custom_call.1} parent=1 // pred_fallthru
      _
    %449 = vsyncpa [#allocation3], 1
    %450 = vsyncpa [#allocation6], 1
    %451 = vsyncpa [#allocation4], 1

</llo_original>
